<compile_context>
chip_gen: v6e
topology: v6e:2x2x1
jax: 0.10.0
libtpu: 0.0.40
codegen_flags: <defaults>
</compile_context>

<pallas_src>
import functools

import jax
import jax.numpy as jnp
from jax.experimental import pallas as pl
from jax.experimental.pallas import tpu as pltpu


LANE = 128          # padded feature width
TILE_M_DEFAULT = 256  # node-row tile (v6e/v7x MXU-friendly, v7x VMEM-safe)


def _round_up(x, m):
    return ((x + m - 1) // m) * m


def _choose_tiling(num_nodes):
    """Pick a row tile and a node padding that is a multiple of it."""
    tile_m = min(TILE_M_DEFAULT, _round_up(num_nodes, LANE))
    n_pad = _round_up(num_nodes, tile_m)
    return n_pad, tile_m


def _vmem_limit_bytes():
    """Generation-aware scoped-VMEM override (75% of physical), or None."""
    try:
        return int(pltpu.get_tpu_info().vmem_capacity_bytes * 3 // 4)
    except Exception:
        return None


# ----------------------------- Pallas kernel ------------------------------ #
def _gcn_stack_kernel(x_ref, adj_ref, w_ref, b_ref, o_ref, h_ref, xw_ref,
                      *, tile_m, num_layers):
    """Fused GCN stack over grid (layer l, node-row-tile i).

    h_{l+1} = relu(A_hat @ (h_l @ W_l) + b_l); last layer without relu.
    h_ref / xw_ref are persistent VMEM scratch carried across grid steps.
    """
    l = pl.program_id(0)
    i = pl.program_id(1)

    # Layer 0 input is x; afterwards h is carried in scratch.
    @pl.when((l == 0) & (i == 0))
    def _():
        h_ref[...] = x_ref[...]

    # XW = h @ W_l, computed once per layer (first row tile), kept resident.
    @pl.when(i == 0)
    def _():
        xw_ref[...] = jnp.dot(
            h_ref[...], w_ref[...],
            preferred_element_type=jnp.float32).astype(xw_ref.dtype)

    # out_tile = A_hat[row tile] @ XW + b   (MXU, f32 accumulation; VPU bias)
    out = jnp.dot(adj_ref[...], xw_ref[...],
                  preferred_element_type=jnp.float32) + b_ref[...]

    # Intermediate layers: ReLU, write this row tile back into persistent h.
    # (Safe: XW for this layer is already computed, so overwriting h is fine.)
    @pl.when(l < num_layers - 1)
    def _():
        row0 = pl.multiple_of(i * tile_m, tile_m)
        h_ref[pl.ds(row0, tile_m), :] = jnp.maximum(out, 0.0).astype(h_ref.dtype)
        # TODO(synk): dropout p=0.0 (train or eval) is identity -> omitted.

    # Last layer: no ReLU, emit the f32 result tile (lane-dense full-width vst).
    @pl.when(l == num_layers - 1)
    def _():
        o_ref[...] = out.astype(o_ref.dtype)


def gcn_forward(params, x, adj_norm):
    """Mirrors GCN.forward: all layers in one Pallas call, relu between layers."""
    n, in_dim = x.shape
    num_layers = len(params)
    out_dim = params[-1][0].shape[1]

    n_pad, tile_m = _choose_tiling(n)
    f_pad = LANE   # all feature dims (16/32/8) fit in one 128-lane tile
    assert max([in_dim] + [w.shape[1] for w, _ in params]) <= f_pad

    # --- A_hat: prefer already built at n_pad (no extra Np^2 pass) ---
    na = adj_norm.shape[0]
    if na == n_pad:
        adj_p = adj_norm.astype(jnp.bfloat16)
    elif na == n:
        adj_p = jnp.pad(adj_norm, ((0, n_pad - n), (0, n_pad - n))).astype(jnp.bfloat16)
    else:
        raise ValueError(f"adj_norm size {na} must be {n} or padded {n_pad}")

    x_p = jnp.pad(x, ((0, n_pad - n), (0, f_pad - in_dim))).astype(jnp.bfloat16)

    w_stack = jnp.zeros((num_layers, f_pad, f_pad), jnp.bfloat16)
    b_stack = jnp.zeros((num_layers, 1, f_pad), jnp.float32)
    for l, (w, b) in enumerate(params):
        fi, fo = w.shape
        w_stack = w_stack.at[l, :fi, :fo].set(w.astype(jnp.bfloat16))
        b_stack = b_stack.at[l, 0, :fo].set(b.astype(jnp.float32))

    n_tiles = n_pad // tile_m
    kernel = functools.partial(_gcn_stack_kernel, tile_m=tile_m,
                               num_layers=num_layers)

    cost = pl.CostEstimate(
        flops=2 * num_layers * (n_pad * f_pad * f_pad + n_pad * n_pad * f_pad),
        transcendentals=0,
        bytes_accessed=(num_layers * n_pad * n_pad * 2     # A_hat streamed per layer
                        + n_pad * f_pad * 2                # x
                        + num_layers * f_pad * f_pad * 2   # W
                        + num_layers * f_pad * 4           # b
                        + num_layers * n_pad * f_pad * 4), # output writebacks
    )

    out_p = pl.pallas_call(
        kernel,
        out_shape=jax.ShapeDtypeStruct((n_pad, f_pad), jnp.float32),
        grid_spec=pltpu.PrefetchScalarGridSpec(
            num_scalar_prefetch=0,
            grid=(num_layers, n_tiles),
            in_specs=[
                # x: whole (small) array, constant block index -> DMA'd once.
                pl.BlockSpec((n_pad, f_pad), lambda l, i: (0, 0)),
                # A_hat: row tile, double-buffered / streamed by the pipeline.
                pl.BlockSpec((tile_m, n_pad), lambda l, i: (i, 0)),
                # W_l / b_l: re-fetched only when the layer index changes.
                pl.BlockSpec((None, f_pad, f_pad), lambda l, i: (l, 0, 0)),
                pl.BlockSpec((None, 1, f_pad), lambda l, i: (l, 0, 0)),
            ],
            out_specs=pl.BlockSpec((tile_m, f_pad), lambda l, i: (i, 0)),
            scratch_shapes=[
                pltpu.VMEM((n_pad, f_pad), jnp.bfloat16),  # h   (persistent)
                pltpu.VMEM((n_pad, f_pad), jnp.bfloat16),  # XW  (per layer)
            ],
        ),
        compiler_params=pltpu.CompilerParams(
            # Layer axis must be arbitrary (h carries across it); row axis kept
            # arbitrary too because h/XW scratch is per-core (see header note).
            dimension_semantics=("arbitrary", "arbitrary"),
            vmem_limit_bytes=_vmem_limit_bytes(),
        ),
        cost_estimate=cost,
    )(x_p, adj_p, w_stack, b_stack)

    return out_p[:n, :out_dim]


# ------------------------------ JAX glue ----------------------------------- #
def build_normalized_adjacency(edge_index, num_nodes, padded_size=None):
    """Dense A_hat = D^-1/2 (A + I) D^-1/2 built directly at the padded size.

    Self loops are added only for real nodes, so padded rows/columns of A_hat
    are exactly zero (deg = 0 -> dinv = 0).  Note: assumes edge_index has no
    pre-existing self loops; duplicate edges accumulate weight (same as
    scatter-add message passing on a multigraph).
    """
    n_pad = num_nodes if padded_size is None else padded_size
    src, dst = edge_index[0], edge_index[1]
    adj = jnp.zeros((n_pad, n_pad), jnp.float32)
    adj = adj.at[dst, src].add(1.0)                      # message src -> dst
    idx = jnp.arange(num_nodes)
    adj = adj.at[idx, idx].add(1.0)                      # self loops (real nodes)
    deg = adj.sum(axis=1)
    dinv = jnp.where(deg > 0, 1.0 / jnp.sqrt(deg), 0.0)
    return dinv[:, None] * adj * dinv[None, :]


def init_gcn_params(key, in_dim, hid_dim, out_dim, num_layers):
    """Glorot-uniform weights, zero biases (GCNConv default init)."""
    dims = [in_dim] + [hid_dim] * (num_layers - 1) + [out_dim]
    params = []
    for i in range(num_layers):
        key, wkey = jax.random.split(key)
        fan_in, fan_out = dims[i], dims[i + 1]
        limit = jnp.sqrt(6.0 / (fan_in + fan_out))
        w = jax.random.uniform(wkey, (fan_in, fan_out), jnp.float32, -limit, limit)
        b = jnp.zeros((fan_out,), jnp.float32)
        params.append((w, b))
    return params


def gcn_forward_reference(params, x, adj_norm):
    """Pure-JAX f32 reference (for a loose bf16-tolerance sanity check)."""
    h = x
    for w, b in params[:-1]:
        h = jnp.maximum(adj_norm @ (h @ w) + b[None, :], 0.0)
    w, b = params[-1]
    return adj_norm @ (h @ w) + b[None, :]


# ------------------------------- driver ------------------------------------ #
if __name__ == "__main__":
    N_NODES = 64
    IN_DIM, HID_DIM, OUT_DIM = 16, 32, 8
    NUM_LAYERS = 3
    NUM_EDGES = 256

    key = jax.random.PRNGKey(0)
    kx, ke, kp = jax.random.split(key, 3)

    x = jax.random.normal(kx, (N_NODES, IN_DIM), jnp.float32)
    edge_index = jax.random.randint(ke, (2, NUM_EDGES), 0, N_NODES, jnp.int32)

    n_pad, _ = _choose_tiling(N_NODES)
    adj_norm = build_normalized_adjacency(edge_index, N_NODES, padded_size=n_pad)
    params = init_gcn_params(kp, IN_DIM, HID_DIM, OUT_DIM, NUM_LAYERS)

    out = gcn_forward(params, x, adj_norm)
    out = jax.block_until_ready(out)

    assert out.shape == (N_NODES, OUT_DIM)
    assert bool(jnp.all(jnp.isfinite(out)))

    # Loose tolerance: kernel uses bf16 MXU operands with f32 accumulation.
    ref = gcn_forward_reference(params, x, adj_norm[:N_NODES, :N_NODES])
    assert jnp.allclose(out, ref, rtol=5e-2, atol=2e-1), (
        float(jnp.max(jnp.abs(out - ref))))

    print("KERNEL_OK")
</pallas_src>

<mosaic_0001>
module attributes {stable_mosaic.version = 11 : i64} {
  func.func @_gcn_stack_kernel(%arg0: i32, %arg1: i32, %arg2: memref<128x128xbf16, #tpu.memory_space<vmem>>, %arg3: memref<128x128xbf16, #tpu.memory_space<vmem>>, %arg4: memref<1x128x128xbf16, #tpu.memory_space<vmem>>, %arg5: memref<1x1x128xf32, #tpu.memory_space<vmem>>, %arg6: memref<128x128xf32, #tpu.memory_space<vmem>>, %arg7: memref<128x128xbf16, #tpu.memory_space<vmem>>, %arg8: memref<128x128xbf16, #tpu.memory_space<vmem>>) attributes {dimension_semantics = [#tpu.dimension_semantics<arbitrary>, #tpu.dimension_semantics<arbitrary>], iteration_bounds = array<i64: 3, 1>, scalar_prefetch = 0 : i64, scratch_operands = 2 : i64, tpu.core_type = #tpu.core_type<tc>, window_params = [{pipeline_mode = #tpu.pipeline_mode<synchronous>, transform_indices = @transform_0, window_bounds = array<i64: 128, 128>}, {transform_indices = @transform_1, window_bounds = array<i64: 128, 128>}, {transform_indices = @transform_2, window_bounds = array<i64: 1, 128, 128>}, {transform_indices = @transform_3, window_bounds = array<i64: 1, 1, 128>}, {transform_indices = @transform_4, window_bounds = array<i64: 128, 128>}]} {
    %c0_i32 = arith.constant 0 : i32
    %0 = arith.cmpi eq, %arg0, %c0_i32 : i32
    %c0_i32_0 = arith.constant 0 : i32
    %1 = arith.cmpi eq, %arg1, %c0_i32_0 : i32
    %2 = arith.andi %0, %1 : i1
    %3 = arith.extui %2 : i1 to i32
    %c0_i32_1 = arith.constant 0 : i32
    %4 = arith.cmpi ne, %3, %c0_i32_1 : i32
    scf.if %4 {
      %c0_13 = arith.constant 0 : index
      %c0_14 = arith.constant 0 : index
      %21 = vector.load %arg2[%c0_13, %c0_14] : memref<128x128xbf16, #tpu.memory_space<vmem>>, vector<128x128xbf16>
      %c0_15 = arith.constant 0 : index
      %c0_16 = arith.constant 0 : index
      %22 = vector.load %arg7[%c0_15, %c0_16] : memref<128x128xbf16, #tpu.memory_space<vmem>>, vector<128x128xbf16>
      tpu.vector_store %arg7[%c0_15, %c0_16], %21 {strides = array<i32>} : memref<128x128xbf16, #tpu.memory_space<vmem>>, vector<128x128xbf16>,
    } else {
    }
    %c0_i32_2 = arith.constant 0 : i32
    %5 = arith.cmpi eq, %arg1, %c0_i32_2 : i32
    %6 = arith.extui %5 : i1 to i32
    %c0_i32_3 = arith.constant 0 : i32
    %7 = arith.cmpi ne, %6, %c0_i32_3 : i32
    scf.if %7 {
      %c0_13 = arith.constant 0 : index
      %c0_14 = arith.constant 0 : index
      %21 = vector.load %arg7[%c0_13, %c0_14] : memref<128x128xbf16, #tpu.memory_space<vmem>>, vector<128x128xbf16>
      %c0_15 = arith.constant 0 : index
      %c0_16 = arith.constant 0 : index
      %c0_17 = arith.constant 0 : index
      %22 = vector.load %arg4[%c0_15, %c0_16, %c0_17] : memref<1x128x128xbf16, #tpu.memory_space<vmem>>, vector<1x128x128xbf16>
      %23 = vector.shape_cast %22 : vector<1x128x128xbf16> to vector<128x128xbf16>
      %cst_18 = arith.constant dense<0.000000e+00> : vector<128x128xf32>
      %24 = tpu.matmul %21, %23, %cst_18 {dimension_numbers = #tpu.dot_dimension_numbers<[1], [0], [0], [1], [0, 0, 1, 1], [], []>} : vector<128x128xbf16>, vector<128x128xbf16>, vector<128x128xf32> -> vector<128x128xf32>
      %25 = arith.truncf %24 : vector<128x128xf32> to vector<128x128xbf16>
      %c0_19 = arith.constant 0 : index
      %c0_20 = arith.constant 0 : index
      %26 = vector.load %arg8[%c0_19, %c0_20] : memref<128x128xbf16, #tpu.memory_space<vmem>>, vector<128x128xbf16>
      tpu.vector_store %arg8[%c0_19, %c0_20], %25 {strides = array<i32>} : memref<128x128xbf16, #tpu.memory_space<vmem>>, vector<128x128xbf16>,
    } else {
    }
    %c0 = arith.constant 0 : index
    %c0_4 = arith.constant 0 : index
    %8 = vector.load %arg3[%c0, %c0_4] : memref<128x128xbf16, #tpu.memory_space<vmem>>, vector<128x128xbf16>
    %c0_5 = arith.constant 0 : index
    %c0_6 = arith.constant 0 : index
    %9 = vector.load %arg8[%c0_5, %c0_6] : memref<128x128xbf16, #tpu.memory_space<vmem>>, vector<128x128xbf16>
    %cst = arith.constant dense<0.000000e+00> : vector<128x128xf32>
    %10 = tpu.matmul %8, %9, %cst {dimension_numbers = #tpu.dot_dimension_numbers<[1], [0], [0], [1], [0, 0, 1, 1], [], []>} : vector<128x128xbf16>, vector<128x128xbf16>, vector<128x128xf32> -> vector<128x128xf32>
    %c0_7 = arith.constant 0 : index
    %c0_8 = arith.constant 0 : index
    %c0_9 = arith.constant 0 : index
    %11 = vector.load %arg5[%c0_7, %c0_8, %c0_9] : memref<1x1x128xf32, #tpu.memory_space<vmem>>, vector<1x1x128xf32>
    %12 = vector.shape_cast %11 : vector<1x1x128xf32> to vector<1x128xf32>
    %13 = vector.broadcast %12 : vector<1x128xf32> to vector<128x128xf32>
    %14 = arith.addf %10, %13 : vector<128x128xf32>
    %c2_i32 = arith.constant 2 : i32
    %15 = arith.cmpi slt, %arg0, %c2_i32 : i32
    %16 = arith.extui %15 : i1 to i32
    %c0_i32_10 = arith.constant 0 : i32
    %17 = arith.cmpi ne, %16, %c0_i32_10 : i32
    scf.if %17 {
      %c128_i32 = arith.constant 128 : i32
      %21 = arith.muli %arg1, %c128_i32 : i32
      %22 = tpu.assume_multiple %21, 128 : i32
      %cst_13 = arith.constant 0.000000e+00 : f32
      %23 = vector.broadcast %cst_13 : f32 to vector<128x128xf32>
      %24 = arith.maximumf %14, %23 : vector<128x128xf32>
      %25 = arith.truncf %24 : vector<128x128xf32> to vector<128x128xbf16>
      %26 = arith.index_cast %22 : i32 to index
      %c0_14 = arith.constant 0 : index
      %27 = vector.load %arg7[%26, %c0_14] : memref<128x128xbf16, #tpu.memory_space<vmem>>, vector<128x128xbf16>
      tpu.vector_store %arg7[%26, %c0_14], %25 {strides = array<i32>} : memref<128x128xbf16, #tpu.memory_space<vmem>>, vector<128x128xbf16>,
    } else {
    }
    %c2_i32_11 = arith.constant 2 : i32
    %18 = arith.cmpi eq, %arg0, %c2_i32_11 : i32
    %19 = arith.extui %18 : i1 to i32
    %c0_i32_12 = arith.constant 0 : i32
    %20 = arith.cmpi ne, %19, %c0_i32_12 : i32
    scf.if %20 {
      %c0_13 = arith.constant 0 : index
      %c0_14 = arith.constant 0 : index
      %21 = vector.load %arg6[%c0_13, %c0_14] : memref<128x128xf32, #tpu.memory_space<vmem>>, vector<128x128xf32>
      tpu.vector_store %arg6[%c0_13, %c0_14], %14 {strides = array<i32>} : memref<128x128xf32, #tpu.memory_space<vmem>>, vector<128x128xf32>,
    } else {
    }
    return
  }
  func.func @transform_0(%arg0: i32, %arg1: i32) -> (i32, i32) {
    %c0_i32 = arith.constant 0 : i32
    %c0_i32_0 = arith.constant 0 : i32
    %c0_i32_1 = arith.constant 0 : i32
    return %c0_i32, %c0_i32_0 : i32, i32
  }
  func.func @transform_1(%arg0: i32, %arg1: i32) -> (i32, i32) {
    %c0_i32 = arith.constant 0 : i32
    %c0_i32_0 = arith.constant 0 : i32
    return %arg1, %c0_i32 : i32, i32
  }
  func.func @transform_2(%arg0: i32, %arg1: i32) -> (i32, i32, i32) {
    %c0_i32 = arith.constant 0 : i32
    %c0_i32_0 = arith.constant 0 : i32
    %c0_i32_1 = arith.constant 0 : i32
    return %arg0, %c0_i32, %c0_i32_0 : i32, i32, i32
  }
  func.func @transform_3(%arg0: i32, %arg1: i32) -> (i32, i32, i32) {
    %c0_i32 = arith.constant 0 : i32
    %c0_i32_0 = arith.constant 0 : i32
    %c0_i32_1 = arith.constant 0 : i32
    return %arg0, %c0_i32, %c0_i32_0 : i32, i32, i32
  }
  func.func @transform_4(%arg0: i32, %arg1: i32) -> (i32, i32) {
    %c0_i32 = arith.constant 0 : i32
    %c0_i32_0 = arith.constant 0 : i32
    return %arg1, %c0_i32 : i32, i32
  }
}

</mosaic_0001>

<llo_original>
// kernel: tpu_custom_call.1
$region0: #{tpu_custom_call.1}
  #allocation0 [shape = 'u32[]', space=smem, size = 0x4, offset = 0x4, fixed_abs, tag = 'smem constant byte address 0x4 - core index']
  #allocation1 [shape = 'u32[144,128]{1,0:T(1,128)}', space=vmem, size = 0x12000, scoped, tag = 'internal scratch']
  #allocation2 [shape = 'bf16[128,128]{1,0:T(8,128)(2,1)}', space=vmem, size = 0x8000, scoped, tag = 'scratch operand']
  #allocation3 [shape = 'bf16[128,128]{1,0:T(8,128)(2,1)}', space=vmem, size = 0x8000, scoped, tag = 'scratch operand']
  %s0 = inlined_call_operand.hbm [shape: bf16[128,128], index: 0, kind: input, shape index: {}]
  %s1 = inlined_call_operand.hbm [shape: bf16[128,128], index: 1, kind: input, shape index: {}]
  %s2 = inlined_call_operand.hbm [shape: bf16[3,128,128], index: 2, kind: input, shape index: {}]
  %s3 = inlined_call_operand.vmem [shape: f32[3,1,128], index: 3, kind: input, shape index: {}]
  %s4 = inlined_call_operand.hbm [shape: f32[128,128], index: 4, kind: output, shape index: {}]
  %s5 = sld [smem:[#allocation0]]
  $region77: #{tpu_custom_call.1} parent=0
    _
  %s7 = ssub.s32 1, %s5
  %s8 = scalar_select 0, %s7, %s5
  $region1: #{tpu_custom_call.1} parent=0
    #allocation4 [shape = 'u8[32768]{0}', space=vmem, size = 0x8000, scoped, tag = 'input window, operand 0, single buffered']
    #allocation5 [shape = 's32[2]{0}', space=sflag, size = 0x8, scoped, tag = 'scoped memory for tpu_custom_call.1']
    #allocation6 [shape = 's32[2]{0}', space=sflag, size = 0x8, scoped, tag = 'scoped memory for tpu_custom_call.1']
    #allocation7 [shape = 'u8[32768]{0}', space=vmem, size = 0x8000, scoped, tag = 'input window, operand 1, single buffered']
    #allocation8 [shape = 's32[1]{0}', space=sflag, size = 0x4, scoped, tag = 'scoped memory for tpu_custom_call.1']
    #allocation9 [shape = 'u8[65536]{0}', space=vmem, size = 0x10000, scoped, tag = 'input window, operand 2']
    #allocation10 [shape = 'u8[65536]{0}', space=vmem, size = 0x10000, scoped, tag = 'output window, operand 0, single buffered']
    %9 = vsyncpa [#allocation5], 0
    %10 = vsyncpa [#allocation8], 0
    %11 = vsyncpa [#allocation6], 0
    loop: start=0, step=1, limit=5
    $region2: #{tpu_custom_call.1} parent=1 // loop_pre_header
      _
    $region3: #{tpu_custom_call.1} parent=1 // loop_header
      %s13 = sphi 0, %s17
      %p14 = scmp.ge.s32.totalorder %s13, 5
      %s20 = sphi 0, %s32
      %s21 = sphi 0, %s28
      %s22 = sphi 0, %s20
      %s23 = sphi 0, %s21
      %s24 = sphi 0, %s22
      %s25 = sphi 0, %s23
      %s33 = sphi 0, %s33
      %s35 = sphi 0, %s33
      %s36 = sphi 0, %s35
      %s50 = sphi 0, %s36
      %s56 = sphi 0, %s58
      %s59 = sphi 0, %s56
      %s60 = sphi 0, %s59
      %s76 = sphi 0, %s60
      %s82 = sphi 0, %s84
      %s85 = sphi 0, %s82
      %s86 = sphi 0, %s85
      %s102 = sphi 0, %s86
      %s108 = sphi 0, %s110
      %s111 = sphi 0, %s108
      %s112 = sphi 0, %s111
      %s128 = sphi 0, %s112
      %s134 = sphi 0, %s136
      %s137 = sphi 0, %s134
      %s138 = sphi 0, %s137
      %s154 = sphi 0, %s138
    $region4: #{tpu_custom_call.1} parent=1 // loop_header_branch
      %16 = sbr.rel (%p14) target = $region8
    $region5: #{tpu_custom_call.1} parent=1 // loop_body
      %s18 = ssub.s32 %s13, 1
      %s19 = ssub.s32 %s13, 2
      %s26 = sadd.s32 1, %s21
      %p27 = scmp.ge.s32.totalorder %s26, 1
      %s28 = scalar_select %p27, 0, %s26
      %s29 = sadd.s32 1, %s20
      %s30 = scalar_select %p27, %s29, %s20
      %p31 = scmp.ge.s32.totalorder %s30, 3
      %s32 = scalar_select %p31, 0, %s30
      %s34 = sadd.s32 %s33, 1
      %p37 = scmp.eq.s32.totalorder %s13, 2
      %p38 = scmp.ne.s32.totalorder %s33, %s35
      %p39 = scmp.eq.s32.totalorder %s13, 0
      %p40 = por %p38, %p39
      %p41 = scmp.ne.s32.totalorder %s33, %s35
      %p42 = scmp.eq.s32.totalorder %s18, 2
      %p43 = por %p41, %p42
      %p44 = scmp.ne.s32.totalorder %s35, %s36
      %p45 = scmp.eq.s32.totalorder %s18, 0
      %p46 = por %p44, %p45
      %p47 = scmp.ne.s32.totalorder %s35, %s36
      %p48 = scmp.eq.s32.totalorder %s19, 2
      %p49 = por %p47, %p48
      %p51 = scmp.ne.s32.totalorder %s36, %s50
      %p52 = scmp.eq.s32.totalorder %s19, 0
      %p53 = por %p51, %p52
      %s54 = ssub.s32 %s21, %s28
      %p55 = scmp.eq.s32.totalorder %s54, 0
      %s57 = sadd.s32 %s56, 1
      %s58 = scalar_select %p55, %s56, %s57
      %p61 = pneg %p55
      %p62 = scmp.eq.s32.totalorder %s13, 2
      %p63 = por %p61, %p62
      %p64 = scmp.ne.s32.totalorder %s56, %s59
      %p65 = scmp.eq.s32.totalorder %s13, 0
      %p66 = por %p64, %p65
      %p67 = scmp.ne.s32.totalorder %s56, %s59
      %p68 = scmp.eq.s32.totalorder %s18, 2
      %p69 = por %p67, %p68
      %p70 = scmp.ne.s32.totalorder %s59, %s60
      %p71 = scmp.eq.s32.totalorder %s18, 0
      %p72 = por %p70, %p71
      %p73 = scmp.ne.s32.totalorder %s59, %s60
      %p74 = scmp.eq.s32.totalorder %s19, 2
      %p75 = por %p73, %p74
      %p77 = scmp.ne.s32.totalorder %s60, %s76
      %p78 = scmp.eq.s32.totalorder %s19, 0
      %p79 = por %p77, %p78
      %s80 = ssub.s32 %s20, %s32
      %p81 = scmp.eq.s32.totalorder %s80, 0
      %s83 = sadd.s32 %s82, 1
      %s84 = scalar_select %p81, %s82, %s83
      %p87 = pneg %p81
      %p88 = scmp.eq.s32.totalorder %s13, 2
      %p89 = por %p87, %p88
      %p90 = scmp.ne.s32.totalorder %s82, %s85
      %p91 = scmp.eq.s32.totalorder %s13, 0
      %p92 = por %p90, %p91
      %p93 = scmp.ne.s32.totalorder %s82, %s85
      %p94 = scmp.eq.s32.totalorder %s18, 2
      %p95 = por %p93, %p94
      %p96 = scmp.ne.s32.totalorder %s85, %s86
      %p97 = scmp.eq.s32.totalorder %s18, 0
      %p98 = por %p96, %p97
      %p99 = scmp.ne.s32.totalorder %s85, %s86
      %p100 = scmp.eq.s32.totalorder %s19, 2
      %p101 = por %p99, %p100
      %p103 = scmp.ne.s32.totalorder %s86, %s102
      %p104 = scmp.eq.s32.totalorder %s19, 0
      %p105 = por %p103, %p104
      %s106 = ssub.s32 %s20, %s32
      %p107 = scmp.eq.s32.totalorder %s106, 0
      %s109 = sadd.s32 %s108, 1
      %s110 = scalar_select %p107, %s108, %s109
      %p113 = pneg %p107
      %p114 = scmp.eq.s32.totalorder %s13, 2
      %p115 = por %p113, %p114
      %p116 = scmp.ne.s32.totalorder %s108, %s111
      %p117 = scmp.eq.s32.totalorder %s13, 0
      %p118 = por %p116, %p117
      %p119 = scmp.ne.s32.totalorder %s108, %s111
      %p120 = scmp.eq.s32.totalorder %s18, 2
      %p121 = por %p119, %p120
      %p122 = scmp.ne.s32.totalorder %s111, %s112
      %p123 = scmp.eq.s32.totalorder %s18, 0
      %p124 = por %p122, %p123
      %p125 = scmp.ne.s32.totalorder %s111, %s112
      %p126 = scmp.eq.s32.totalorder %s19, 2
      %p127 = por %p125, %p126
      %p129 = scmp.ne.s32.totalorder %s112, %s128
      %p130 = scmp.eq.s32.totalorder %s19, 0
      %p131 = por %p129, %p130
      %s132 = ssub.s32 %s21, %s28
      %p133 = scmp.eq.s32.totalorder %s132, 0
      %s135 = sadd.s32 %s134, 1
      %s136 = scalar_select %p133, %s134, %s135
      %p139 = pneg %p133
      %p140 = scmp.eq.s32.totalorder %s13, 2
      %p141 = por %p139, %p140
      %p142 = scmp.ne.s32.totalorder %s134, %s137
      %p143 = scmp.eq.s32.totalorder %s13, 0
      %p144 = por %p142, %p143
      %p145 = scmp.ne.s32.totalorder %s134, %s137
      %p146 = scmp.eq.s32.totalorder %s18, 2
      %p147 = por %p145, %p146
      %p148 = scmp.ne.s32.totalorder %s137, %s138
      %p149 = scmp.eq.s32.totalorder %s18, 0
      %p150 = por %p148, %p149
      %p151 = scmp.ne.s32.totalorder %s137, %s138
      %p152 = scmp.eq.s32.totalorder %s19, 2
      %p153 = por %p151, %p152
      %p155 = scmp.ne.s32.totalorder %s138, %s154
      %p156 = scmp.eq.s32.totalorder %s19, 0
      %p157 = por %p155, %p156
      %p158 = scmp.le.s32.totalorder 1, %s13
      %p159 = scmp.lt.s32.totalorder %s13, 4
      %p160 = pnand %p158, %p159
      %p161 = pneg %p160
      // Predicated region
      $region9: #{tpu_custom_call.1} parent=5 // pred_check
        _
      $region10: #{tpu_custom_call.1} parent=5 // pred_check_branch
        %163 = sbr.rel (%p160) target = $region12
      $region11: #{tpu_custom_call.1} parent=5 // pred_region
        %s164 = ssub.s32 %s13, 1
        // Predicated region
        $region13: #{tpu_custom_call.1} parent=11 // pred_check
          %p165 = pneg %p46
        $region14: #{tpu_custom_call.1} parent=11 // pred_check_branch
          %167 = sbr.rel (%p165) target = $region16
        $region15: #{tpu_custom_call.1} parent=11 // pred_region
          %s169 = ssub.s32 1024, 1024
          %170 = vsyncadd [#allocation5], %s169
          %s171 = sshll.u32 [#allocation4], 4
          %s172 = int_to_ptr.vmem [resolvable:$true] %s171
          %177 = dma.hbm_to_vmem [thread:$0]  %s0, 1024, %s172, [#allocation5], 64, 64, 4
        $region16: #{tpu_custom_call.1} parent=11 // pred_fallthru
          _
        // Predicated region
        $region17: #{tpu_custom_call.1} parent=11 // pred_check
          %p178 = pneg %p72
        $region18: #{tpu_custom_call.1} parent=11 // pred_check_branch
          %180 = sbr.rel (%p178) target = $region20
        $region19: #{tpu_custom_call.1} parent=11 // pred_region
          %s181 = smul.u32 16, %s23
          %s183 = ssub.s32 1024, 1024
          %184 = vsyncadd [#allocation8], %s183
          %s185 = smul.addr %s181, 64
          %s186 = scalar_lea.hbm %s1, %s185
          %s187 = sshll.u32 [#allocation7], 4
          %s188 = int_to_ptr.vmem [resolvable:$true] %s187
          %193 = dma.hbm_to_vmem [thread:$0]  %s186, 1024, %s188, [#allocation8], 64, 64, 4
        $region20: #{tpu_custom_call.1} parent=11 // pred_fallthru
          _
      $region12: #{tpu_custom_call.1} parent=5 // pred_fallthru
        _
      %p194 = scmp.lt.s32.totalorder %s13, 3
      // Predicated region
      $region21: #{tpu_custom_call.1} parent=5 // pred_check
        %p195 = pneg %p194
      $region22: #{tpu_custom_call.1} parent=5 // pred_check_branch
        %197 = sbr.rel (%p195) target = $region24
      $region23: #{tpu_custom_call.1} parent=5 // pred_region
        // Predicated region
        $region25: #{tpu_custom_call.1} parent=23 // pred_check
          %p198 = pneg %p92
        $region26: #{tpu_custom_call.1} parent=23 // pred_check_branch
          %200 = sbr.rel (%p198) target = $region28
        $region27: #{tpu_custom_call.1} parent=23 // pred_region
          %s201 = sand.u32 %s13, 1
          %s202 = scalar_lea.sflag [#allocation5], %s201
          %s203 = sand.u32 %s82, 1
          %s204 = smul.addr %s203, 64
          %s205 = scalar_lea.vmem [#allocation9], %s204
          %s207 = ssub.s32 1024, 1024
          %208 = vsyncadd %s202, %s207
          %s209 = smul.addr %s20, 16
          %s210 = smul.addr %s209, 64
          %s211 = scalar_lea.hbm %s2, %s210
          %s212 = sshll.u32 %s205, 4
          %s213 = int_to_ptr.vmem [resolvable:$true] %s212
          %218 = dma.hbm_to_vmem [thread:$0]  %s211, 1024, %s213, %s202, 64, 64, 4
        $region28: #{tpu_custom_call.1} parent=23 // pred_fallthru
          _
        // Predicated region
        $region29: #{tpu_custom_call.1} parent=23 // pred_check
          %p219 = pneg %p118
        $region30: #{tpu_custom_call.1} parent=23 // pred_check_branch
          %221 = sbr.rel (%p219) target = $region32
        $region31: #{tpu_custom_call.1} parent=23 // pred_region
          %p222 = scmp.lt.s32.totalorder %s20, 2
          %s223 = scalar_select %p222, %s20, 2
          %s224 = scalar_lea.vmem %s3, %s223
        $region32: #{tpu_custom_call.1} parent=23 // pred_fallthru
          _
      $region24: #{tpu_custom_call.1} parent=5 // pred_fallthru
        _
      %p225 = scmp.le.s32.totalorder 1, %s13
      %p226 = scmp.lt.s32.totalorder %s13, 4
      %p227 = pnand %p225, %p226
      %p228 = pneg %p227
      // Predicated region
      $region33: #{tpu_custom_call.1} parent=5 // pred_check
        _
      $region34: #{tpu_custom_call.1} parent=5 // pred_check_branch
        %230 = sbr.rel (%p227) target = $region36
      $region35: #{tpu_custom_call.1} parent=5 // pred_region
        %s231 = ssub.s32 %s13, 1
        // Predicated region
        $region37: #{tpu_custom_call.1} parent=35 // pred_check
          %p232 = pneg %p46
        $region38: #{tpu_custom_call.1} parent=35 // pred_check_branch
          %234 = sbr.rel (%p232) target = $region40
        $region39: #{tpu_custom_call.1} parent=35 // pred_region
          %235 = dma.done [#allocation5], 1024
        $region40: #{tpu_custom_call.1} parent=35 // pred_fallthru
          _
        // Predicated region
        $region41: #{tpu_custom_call.1} parent=35 // pred_check
          %p236 = pneg %p72
        $region42: #{tpu_custom_call.1} parent=35 // pred_check_branch
          %238 = sbr.rel (%p236) target = $region44
        $region43: #{tpu_custom_call.1} parent=35 // pred_region
          %239 = dma.done [#allocation8], 1024
        $region44: #{tpu_custom_call.1} parent=35 // pred_fallthru
          _
        %s240 = sand.u32 %s18, 1
        %s241 = scalar_lea.sflag [#allocation5], %s240
        %s242 = sand.u32 %s85, 1
        %s243 = smul.addr %s242, 64
        %s244 = scalar_lea.vmem [#allocation9], %s243
        // Predicated region
        $region45: #{tpu_custom_call.1} parent=35 // pred_check
          %p245 = pneg %p98
        $region46: #{tpu_custom_call.1} parent=35 // pred_check_branch
          %247 = sbr.rel (%p245) target = $region48
        $region47: #{tpu_custom_call.1} parent=35 // pred_region
          %248 = dma.done %s241, 1024
        $region48: #{tpu_custom_call.1} parent=35 // pred_fallthru
          _
        %p249 = pneg %p46
        %p250 = pneg %p43
        %p251 = pneg %p72
        %p252 = pneg %p69
        %s253 = sand.u32 %s18, 1
        %s254 = scalar_lea.sflag [#allocation5], %s253
        %s255 = sand.u32 %s85, 1
        %s256 = smul.addr %s255, 64
        %s257 = scalar_lea.vmem [#allocation9], %s256
        %p258 = pneg %p98
        %p259 = pneg %p95
        %p260 = scmp.lt.s32.totalorder %s22, 2
        %s261 = scalar_select %p260, %s22, 2
        %s262 = scalar_lea.vmem %s3, %s261
        %p263 = pneg %p124
        %p264 = pneg %p121
        %p265 = pneg %p150
        %p266 = pneg %p147
        %s267 = smul.u32 16, %s23
        %p268 = scmp.lt.s32.totalorder %s22, 2
        %s269 = scalar_select %p268, %s22, 2
        %s270 = scalar_lea.vmem %s3, %s269
        %s271 = smul.u32 16, %s23
        %p273 = scmp.eq.s32.totalorder %s22, 0
        %p274 = scmp.eq.s32.totalorder %s23, 0
        %p275 = pnand %p273, %p274
        %p276 = pneg %p275
        // Predicated region
        $region49: #{tpu_custom_call.1} parent=35 // pred_check
          _
        $region50: #{tpu_custom_call.1} parent=35 // pred_check_branch
          %278 = sbr.rel (%p275) target = $region52
        $region51: #{tpu_custom_call.1} parent=35 // pred_region
          %v279 = vld [vmem:[#allocation4] sm:$0xf]
          %v280 = vld [vmem:[#allocation4 + $0x4] sm:$0xf]
          %v281 = vld [vmem:[#allocation4 + $0x8] sm:$0xf]
          %v282 = vld [vmem:[#allocation4 + $0xc] sm:$0xf]
          %v283 = vld [vmem:[#allocation4 + $0x10] sm:$0xf]
          %v284 = vld [vmem:[#allocation4 + $0x14] sm:$0xf]
          %v285 = vld [vmem:[#allocation4 + $0x18] sm:$0xf]
          %v286 = vld [vmem:[#allocation4 + $0x1c] sm:$0xf]
          %v287 = vld [vmem:[#allocation4 + $0x20] sm:$0xf]
          %v288 = vld [vmem:[#allocation4 + $0x24] sm:$0xf]
          %v289 = vld [vmem:[#allocation4 + $0x28] sm:$0xf]
          %v290 = vld [vmem:[#allocation4 + $0x2c] sm:$0xf]
          %v291 = vld [vmem:[#allocation4 + $0x30] sm:$0xf]
          %v292 = vld [vmem:[#allocation4 + $0x34] sm:$0xf]
          %v293 = vld [vmem:[#allocation4 + $0x38] sm:$0xf]
          %v294 = vld [vmem:[#allocation4 + $0x3c] sm:$0xf]
          %295 = vst [vmem:[#allocation2] sm:$0xf] %v279
          %296 = vst [vmem:[#allocation2 + $0x4] sm:$0xf] %v280
          %297 = vst [vmem:[#allocation2 + $0x8] sm:$0xf] %v281
          %298 = vst [vmem:[#allocation2 + $0xc] sm:$0xf] %v282
          %299 = vst [vmem:[#allocation2 + $0x10] sm:$0xf] %v283
          %300 = vst [vmem:[#allocation2 + $0x14] sm:$0xf] %v284
          %301 = vst [vmem:[#allocation2 + $0x18] sm:$0xf] %v285
          %302 = vst [vmem:[#allocation2 + $0x1c] sm:$0xf] %v286
          %303 = vst [vmem:[#allocation2 + $0x20] sm:$0xf] %v287
          %304 = vst [vmem:[#allocation2 + $0x24] sm:$0xf] %v288
          %305 = vst [vmem:[#allocation2 + $0x28] sm:$0xf] %v289
          %306 = vst [vmem:[#allocation2 + $0x2c] sm:$0xf] %v290
          %307 = vst [vmem:[#allocation2 + $0x30] sm:$0xf] %v291
          %308 = vst [vmem:[#allocation2 + $0x34] sm:$0xf] %v292
          %309 = vst [vmem:[#allocation2 + $0x38] sm:$0xf] %v293
          %310 = vst [vmem:[#allocation2 + $0x3c] sm:$0xf] %v294
        $region52: #{tpu_custom_call.1} parent=35 // pred_fallthru
          _
        // Predicated region
        $region53: #{tpu_custom_call.1} parent=35 // pred_check
          %p311 = pneg %p274
        $region54: #{tpu_custom_call.1} parent=35 // pred_check_branch
          %313 = sbr.rel (%p311) target = $region56
        $region55: #{tpu_custom_call.1} parent=35 // pred_region
          %v314 = vld [vmem:[#allocation2] sm:$0xf]
          %v315 = vld [vmem:[#allocation2 + $0x4] sm:$0xf]
          %v316 = vld [vmem:[#allocation2 + $0x8] sm:$0xf]
          %v317 = vld [vmem:[#allocation2 + $0xc] sm:$0xf]
          %v318 = vld [vmem:[#allocation2 + $0x10] sm:$0xf]
          %v319 = vld [vmem:[#allocation2 + $0x14] sm:$0xf]
          %v320 = vld [vmem:[#allocation2 + $0x18] sm:$0xf]
          %v321 = vld [vmem:[#allocation2 + $0x1c] sm:$0xf]
          %v322 = vld [vmem:[#allocation2 + $0x20] sm:$0xf]
          %v323 = vld [vmem:[#allocation2 + $0x24] sm:$0xf]
          %v324 = vld [vmem:[#allocation2 + $0x28] sm:$0xf]
          %v325 = vld [vmem:[#allocation2 + $0x2c] sm:$0xf]
          %v326 = vld [vmem:[#allocation2 + $0x30] sm:$0xf]
          %v327 = vld [vmem:[#allocation2 + $0x34] sm:$0xf]
          %v328 = vld [vmem:[#allocation2 + $0x38] sm:$0xf]
          %v329 = vld [vmem:[#allocation2 + $0x3c] sm:$0xf]
          %v330 = vld [vmem:[%s244] sm:$0xf]
          %v331 = vld [vmem:[%s244 + $0x4] sm:$0xf]
          %v332 = vld [vmem:[%s244 + $0x8] sm:$0xf]
          %v333 = vld [vmem:[%s244 + $0xc] sm:$0xf]
          %v334 = vld [vmem:[%s244 + $0x10] sm:$0xf]
          %v335 = vld [vmem:[%s244 + $0x14] sm:$0xf]
          %v336 = vld [vmem:[%s244 + $0x18] sm:$0xf]
          %v337 = vld [vmem:[%s244 + $0x1c] sm:$0xf]
          %v338 = vld [vmem:[%s244 + $0x20] sm:$0xf]
          %v339 = vld [vmem:[%s244 + $0x24] sm:$0xf]
          %v340 = vld [vmem:[%s244 + $0x28] sm:$0xf]
          %v341 = vld [vmem:[%s244 + $0x2c] sm:$0xf]
          %v342 = vld [vmem:[%s244 + $0x30] sm:$0xf]
          %v343 = vld [vmem:[%s244 + $0x34] sm:$0xf]
          %v344 = vld [vmem:[%s244 + $0x38] sm:$0xf]
          %v345 = vld [vmem:[%s244 + $0x3c] sm:$0xf]
          %v362 = vunpack.c.l.b16 %v314
          %v363 = vunpack.c.l.b16 %v315
          %v364 = vunpack.c.l.b16 %v316
          %v365 = vunpack.c.l.b16 %v317
          %v366 = vunpack.c.l.b16 %v318
          %v367 = vunpack.c.l.b16 %v319
          %v368 = vunpack.c.l.b16 %v320
          %v369 = vunpack.c.l.b16 %v321
          %v370 = vunpack.c.l.b16 %v322
          %v371 = vunpack.c.l.b16 %v323
          %v372 = vunpack.c.l.b16 %v324
          %v373 = vunpack.c.l.b16 %v325
          %v374 = vunpack.c.l.b16 %v326
          %v375 = vunpack.c.l.b16 %v327
          %v376 = vunpack.c.l.b16 %v328
          %v377 = vunpack.c.l.b16 %v329
          %v378 = vpack.c.b16 %v363, %v362
          %v379 = vpack.c.b16 %v365, %v364
          %v380 = vpack.c.b16 %v367, %v366
          %v381 = vpack.c.b16 %v369, %v368
          %v382 = vpack.c.b16 %v371, %v370
          %v383 = vpack.c.b16 %v373, %v372
          %v384 = vpack.c.b16 %v375, %v374
          %v385 = vpack.c.b16 %v377, %v376
          %v410 = vunpack.c.l.b16 %v330
          %v411 = vunpack.c.l.b16 %v331
          %v412 = vunpack.c.l.b16 %v332
          %v413 = vunpack.c.l.b16 %v333
          %v414 = vunpack.c.l.b16 %v334
          %v415 = vunpack.c.l.b16 %v335
          %v416 = vunpack.c.l.b16 %v336
          %v417 = vunpack.c.l.b16 %v337
          %v418 = vunpack.c.l.b16 %v338
          %v419 = vunpack.c.l.b16 %v339
          %v420 = vunpack.c.l.b16 %v340
          %v421 = vunpack.c.l.b16 %v341
          %v422 = vunpack.c.l.b16 %v342
          %v423 = vunpack.c.l.b16 %v343
          %v424 = vunpack.c.l.b16 %v344
          %v425 = vunpack.c.l.b16 %v345
          %v426 = vpack.c.b16 %v411, %v410
          %v427 = vpack.c.b16 %v413, %v412
          %v428 = vpack.c.b16 %v415, %v414
          %v429 = vpack.c.b16 %v417, %v416
          %v430 = vpack.c.b16 %v419, %v418
          %v431 = vpack.c.b16 %v421, %v420
          %v432 = vpack.c.b16 %v423, %v422
          %v433 = vpack.c.b16 %v425, %v424
          %442 = vmatprep.subr.bf16.mxu0 0
          %443 = vmatpush1.bf16.msra.mxu0 %v433
          %444 = vmatprep.subr.bf16.mxu0 0
          %445 = vmatpush1.bf16.msra.mxu0 %v432
          %446 = vmatprep.subr.bf16.mxu0 0
          %447 = vmatpush1.bf16.msra.mxu0 %v431
          %448 = vmatprep.subr.bf16.mxu0 0
          %449 = vmatpush1.bf16.msra.mxu0 %v430
          %450 = vmatprep.subr.bf16.mxu0 0
          %451 = vmatpush1.bf16.msra.mxu0 %v429
          %452 = vmatprep.subr.bf16.mxu0 0
          %453 = vmatpush1.bf16.msra.mxu0 %v428
          %454 = vmatprep.subr.bf16.mxu0 0
          %455 = vmatpush1.bf16.msra.mxu0 %v427
          %456 = vmatprep.subr.bf16.mxu0 0
          %457 = vmatpush1.bf16.msra.mxu0 %v426
          %458 = vmatprep.subr.bf16.mxu0 0
          %459 = vmatpush2.bf16.msra.mxu0 0
          %460 = vmatprep.subr.bf16.mxu0 0
          %461 = vmatpush2.bf16.msra.mxu0 0
          %462 = vmatprep.subr.bf16.mxu0 0
          %463 = vmatpush2.bf16.msra.mxu0 0
          %464 = vmatprep.subr.bf16.mxu0 0
          %465 = vmatpush2.bf16.msra.mxu0 0
          %466 = vmatprep.subr.bf16.mxu0 0
          %467 = vmatpush2.bf16.msra.mxu0 0
          %468 = vmatprep.subr.bf16.mxu0 0
          %469 = vmatpush2.bf16.msra.mxu0 0
          %470 = vmatprep.subr.bf16.mxu0 0
          %471 = vmatpush2.bf16.msra.mxu0 0
          %472 = vmatprep.subr.bf16.mxu0 0
          %473 = vmatpush2.bf16.msra.mxu0 0
          %474 = vmatprep.mubr.bf16.mxu0 0
          %475 = vmatmul.mubr.bf16.gmra.mxu0 %v378
          %v476 = vpop.f32.mrf.mxu0
          %v477 = vadd.f32 0.0, %v476
          %v478 = vpop.f32.mrf.mxu0
          %v479 = vpop.f32.mrf.mxu0
          %v480 = vadd.f32 0.0, %v479
          %v481 = vpop.f32.mrf.mxu0
          %482 = vmatprep.mubr.bf16.mxu0 0
          %483 = vmatmul.mubr.bf16.gmra.mxu0 %v379
          %v484 = vpop.f32.mrf.mxu0
          %v485 = vadd.f32 0.0, %v484
          %v486 = vpop.f32.mrf.mxu0
          %v487 = vpop.f32.mrf.mxu0
          %v488 = vadd.f32 0.0, %v487
          %v489 = vpop.f32.mrf.mxu0
          %490 = vmatprep.mubr.bf16.mxu0 0
          %491 = vmatmul.mubr.bf16.gmra.mxu0 %v380
          %v492 = vpop.f32.mrf.mxu0
          %v493 = vadd.f32 0.0, %v492
          %v494 = vpop.f32.mrf.mxu0
          %v495 = vpop.f32.mrf.mxu0
          %v496 = vadd.f32 0.0, %v495
          %v497 = vpop.f32.mrf.mxu0
          %498 = vmatprep.mubr.bf16.mxu0 0
          %499 = vmatmul.mubr.bf16.gmra.mxu0 %v381
          %v500 = vpop.f32.mrf.mxu0
          %v501 = vadd.f32 0.0, %v500
          %v502 = vpop.f32.mrf.mxu0
          %v503 = vpop.f32.mrf.mxu0
          %v504 = vadd.f32 0.0, %v503
          %v505 = vpop.f32.mrf.mxu0
          %506 = vmatprep.mubr.bf16.mxu0 0
          %507 = vmatmul.mubr.bf16.gmra.mxu0 %v382
          %v508 = vpop.f32.mrf.mxu0
          %v509 = vadd.f32 0.0, %v508
          %v510 = vpop.f32.mrf.mxu0
          %v511 = vpop.f32.mrf.mxu0
          %v512 = vadd.f32 0.0, %v511
          %v513 = vpop.f32.mrf.mxu0
          %514 = vmatprep.mubr.bf16.mxu0 0
          %515 = vmatmul.mubr.bf16.gmra.mxu0 %v383
          %v516 = vpop.f32.mrf.mxu0
          %v517 = vadd.f32 0.0, %v516
          %v518 = vpop.f32.mrf.mxu0
          %v519 = vpop.f32.mrf.mxu0
          %v520 = vadd.f32 0.0, %v519
          %v521 = vpop.f32.mrf.mxu0
          %522 = vmatprep.mubr.bf16.mxu0 0
          %523 = vmatmul.mubr.bf16.gmra.mxu0 %v384
          %v524 = vpop.f32.mrf.mxu0
          %v525 = vadd.f32 0.0, %v524
          %v526 = vpop.f32.mrf.mxu0
          %v527 = vpop.f32.mrf.mxu0
          %v528 = vadd.f32 0.0, %v527
          %v529 = vpop.f32.mrf.mxu0
          %530 = vmatprep.mubr.bf16.mxu0 0
          %531 = vmatmul.mubr.bf16.gmra.mxu0 %v385
          %v532 = vpop.f32.mrf.mxu0
          %v533 = vadd.f32 0.0, %v532
          %v534 = vpop.f32.mrf.mxu0
          %v535 = vpop.f32.mrf.mxu0
          %v536 = vadd.f32 0.0, %v535
          %v537 = vpop.f32.mrf.mxu0
          %538 = vdwg.mxu0
          %v539 = vpack.c.bf16 %v480, %v477
          %v540 = vpack.c.bf16 %v488, %v485
          %v541 = vpack.c.bf16 %v496, %v493
          %v542 = vpack.c.bf16 %v504, %v501
          %v543 = vpack.c.bf16 %v512, %v509
          %v544 = vpack.c.bf16 %v520, %v517
          %v545 = vpack.c.bf16 %v528, %v525
          %v546 = vpack.c.bf16 %v536, %v533
          %v555 = vunpack.c.l.b16 %v539
          %v556 = vunpack.c.h.b16 %v539
          %v557 = vunpack.c.l.b16 %v540
          %v558 = vunpack.c.h.b16 %v540
          %v559 = vunpack.c.l.b16 %v541
          %v560 = vunpack.c.h.b16 %v541
          %v561 = vunpack.c.l.b16 %v542
          %v562 = vunpack.c.h.b16 %v542
          %v563 = vunpack.c.l.b16 %v543
          %v564 = vunpack.c.h.b16 %v543
          %v565 = vunpack.c.l.b16 %v544
          %v566 = vunpack.c.h.b16 %v544
          %v567 = vunpack.c.l.b16 %v545
          %v568 = vunpack.c.h.b16 %v545
          %v569 = vunpack.c.l.b16 %v546
          %v570 = vunpack.c.h.b16 %v546
          %v571 = vpack.c.b16 %v555, %v555
          %v572 = vpack.c.b16 %v556, %v556
          %v573 = vpack.c.b16 %v557, %v557
          %v574 = vpack.c.b16 %v558, %v558
          %v575 = vpack.c.b16 %v559, %v559
          %v576 = vpack.c.b16 %v560, %v560
          %v577 = vpack.c.b16 %v561, %v561
          %v578 = vpack.c.b16 %v562, %v562
          %v579 = vpack.c.b16 %v563, %v563
          %v580 = vpack.c.b16 %v564, %v564
          %v581 = vpack.c.b16 %v565, %v565
          %v582 = vpack.c.b16 %v566, %v566
          %v583 = vpack.c.b16 %v567, %v567
          %v584 = vpack.c.b16 %v568, %v568
          %v585 = vpack.c.b16 %v569, %v569
          %v586 = vpack.c.b16 %v570, %v570
          %603 = vst [vmem:[#allocation3] sm:$0xf] %v571
          %604 = vst [vmem:[#allocation3 + $0x4] sm:$0xf] %v572
          %605 = vst [vmem:[#allocation3 + $0x8] sm:$0xf] %v573
          %606 = vst [vmem:[#allocation3 + $0xc] sm:$0xf] %v574
          %607 = vst [vmem:[#allocation3 + $0x10] sm:$0xf] %v575
          %608 = vst [vmem:[#allocation3 + $0x14] sm:$0xf] %v576
          %609 = vst [vmem:[#allocation3 + $0x18] sm:$0xf] %v577
          %610 = vst [vmem:[#allocation3 + $0x1c] sm:$0xf] %v578
          %611 = vst [vmem:[#allocation3 + $0x20] sm:$0xf] %v579
          %612 = vst [vmem:[#allocation3 + $0x24] sm:$0xf] %v580
          %613 = vst [vmem:[#allocation3 + $0x28] sm:$0xf] %v581
          %614 = vst [vmem:[#allocation3 + $0x2c] sm:$0xf] %v582
          %615 = vst [vmem:[#allocation3 + $0x30] sm:$0xf] %v583
          %616 = vst [vmem:[#allocation3 + $0x34] sm:$0xf] %v584
          %617 = vst [vmem:[#allocation3 + $0x38] sm:$0xf] %v585
          %618 = vst [vmem:[#allocation3 + $0x3c] sm:$0xf] %v586
        $region56: #{tpu_custom_call.1} parent=35 // pred_fallthru
          _
        %v619 = vld [vmem:[#allocation7] sm:$0xf]
        %v620 = vld [vmem:[#allocation7 + $0x4] sm:$0xf]
        %v621 = vld [vmem:[#allocation7 + $0x8] sm:$0xf]
        %v622 = vld [vmem:[#allocation7 + $0xc] sm:$0xf]
        %v623 = vld [vmem:[#allocation7 + $0x10] sm:$0xf]
        %v624 = vld [vmem:[#allocation7 + $0x14] sm:$0xf]
        %v625 = vld [vmem:[#allocation7 + $0x18] sm:$0xf]
        %v626 = vld [vmem:[#allocation7 + $0x1c] sm:$0xf]
        %v627 = vld [vmem:[#allocation7 + $0x20] sm:$0xf]
        %v628 = vld [vmem:[#allocation7 + $0x24] sm:$0xf]
        %v629 = vld [vmem:[#allocation7 + $0x28] sm:$0xf]
        %v630 = vld [vmem:[#allocation7 + $0x2c] sm:$0xf]
        %v631 = vld [vmem:[#allocation7 + $0x30] sm:$0xf]
        %v632 = vld [vmem:[#allocation7 + $0x34] sm:$0xf]
        %v633 = vld [vmem:[#allocation7 + $0x38] sm:$0xf]
        %v634 = vld [vmem:[#allocation7 + $0x3c] sm:$0xf]
        %v635 = vld [vmem:[#allocation3] sm:$0xf]
        %v636 = vld [vmem:[#allocation3 + $0x4] sm:$0xf]
        %v637 = vld [vmem:[#allocation3 + $0x8] sm:$0xf]
        %v638 = vld [vmem:[#allocation3 + $0xc] sm:$0xf]
        %v639 = vld [vmem:[#allocation3 + $0x10] sm:$0xf]
        %v640 = vld [vmem:[#allocation3 + $0x14] sm:$0xf]
        %v641 = vld [vmem:[#allocation3 + $0x18] sm:$0xf]
        %v642 = vld [vmem:[#allocation3 + $0x1c] sm:$0xf]
        %v643 = vld [vmem:[#allocation3 + $0x20] sm:$0xf]
        %v644 = vld [vmem:[#allocation3 + $0x24] sm:$0xf]
        %v645 = vld [vmem:[#allocation3 + $0x28] sm:$0xf]
        %v646 = vld [vmem:[#allocation3 + $0x2c] sm:$0xf]
        %v647 = vld [vmem:[#allocation3 + $0x30] sm:$0xf]
        %v648 = vld [vmem:[#allocation3 + $0x34] sm:$0xf]
        %v649 = vld [vmem:[#allocation3 + $0x38] sm:$0xf]
        %v650 = vld [vmem:[#allocation3 + $0x3c] sm:$0xf]
        %v651 = vld [vmem:[%s270] sm:$0x1]
        %v653 = vlaneseq
        %v654 = vshrl.u32 %v653, 7
        %v655 = vsub.s32 0, %v654
        %v656 = vrot.slane %v651, %v655
        %v674 = vunpack.c.l.b16 %v619
        %v675 = vunpack.c.l.b16 %v620
        %v676 = vunpack.c.l.b16 %v621
        %v677 = vunpack.c.l.b16 %v622
        %v678 = vunpack.c.l.b16 %v623
        %v679 = vunpack.c.l.b16 %v624
        %v680 = vunpack.c.l.b16 %v625
        %v681 = vunpack.c.l.b16 %v626
        %v682 = vunpack.c.l.b16 %v627
        %v683 = vunpack.c.l.b16 %v628
        %v684 = vunpack.c.l.b16 %v629
        %v685 = vunpack.c.l.b16 %v630
        %v686 = vunpack.c.l.b16 %v631
        %v687 = vunpack.c.l.b16 %v632
        %v688 = vunpack.c.l.b16 %v633
        %v689 = vunpack.c.l.b16 %v634
        %v690 = vpack.c.b16 %v675, %v674
        %v691 = vpack.c.b16 %v677, %v676
        %v692 = vpack.c.b16 %v679, %v678
        %v693 = vpack.c.b16 %v681, %v680
        %v694 = vpack.c.b16 %v683, %v682
        %v695 = vpack.c.b16 %v685, %v684
        %v696 = vpack.c.b16 %v687, %v686
        %v697 = vpack.c.b16 %v689, %v688
        %v722 = vunpack.c.l.b16 %v635
        %v723 = vunpack.c.l.b16 %v636
        %v724 = vunpack.c.l.b16 %v637
        %v725 = vunpack.c.l.b16 %v638
        %v726 = vunpack.c.l.b16 %v639
        %v727 = vunpack.c.l.b16 %v640
        %v728 = vunpack.c.l.b16 %v641
        %v729 = vunpack.c.l.b16 %v642
        %v730 = vunpack.c.l.b16 %v643
        %v731 = vunpack.c.l.b16 %v644
        %v732 = vunpack.c.l.b16 %v645
        %v733 = vunpack.c.l.b16 %v646
        %v734 = vunpack.c.l.b16 %v647
        %v735 = vunpack.c.l.b16 %v648
        %v736 = vunpack.c.l.b16 %v649
        %v737 = vunpack.c.l.b16 %v650
        %v738 = vpack.c.b16 %v723, %v722
        %v739 = vpack.c.b16 %v725, %v724
        %v740 = vpack.c.b16 %v727, %v726
        %v741 = vpack.c.b16 %v729, %v728
        %v742 = vpack.c.b16 %v731, %v730
        %v743 = vpack.c.b16 %v733, %v732
        %v744 = vpack.c.b16 %v735, %v734
        %v745 = vpack.c.b16 %v737, %v736
        %754 = vmatprep.subr.bf16.mxu0 0
        %755 = vmatpush1.bf16.msra.mxu0 %v745
        %756 = vmatprep.subr.bf16.mxu0 0
        %757 = vmatpush1.bf16.msra.mxu0 %v744
        %758 = vmatprep.subr.bf16.mxu0 0
        %759 = vmatpush1.bf16.msra.mxu0 %v743
        %760 = vmatprep.subr.bf16.mxu0 0
        %761 = vmatpush1.bf16.msra.mxu0 %v742
        %762 = vmatprep.subr.bf16.mxu0 0
        %763 = vmatpush1.bf16.msra.mxu0 %v741
        %764 = vmatprep.subr.bf16.mxu0 0
        %765 = vmatpush1.bf16.msra.mxu0 %v740
        %766 = vmatprep.subr.bf16.mxu0 0
        %767 = vmatpush1.bf16.msra.mxu0 %v739
        %768 = vmatprep.subr.bf16.mxu0 0
        %769 = vmatpush1.bf16.msra.mxu0 %v738
        %770 = vmatprep.subr.bf16.mxu0 0
        %771 = vmatpush2.bf16.msra.mxu0 0
        %772 = vmatprep.subr.bf16.mxu0 0
        %773 = vmatpush2.bf16.msra.mxu0 0
        %774 = vmatprep.subr.bf16.mxu0 0
        %775 = vmatpush2.bf16.msra.mxu0 0
        %776 = vmatprep.subr.bf16.mxu0 0
        %777 = vmatpush2.bf16.msra.mxu0 0
        %778 = vmatprep.subr.bf16.mxu0 0
        %779 = vmatpush2.bf16.msra.mxu0 0
        %780 = vmatprep.subr.bf16.mxu0 0
        %781 = vmatpush2.bf16.msra.mxu0 0
        %782 = vmatprep.subr.bf16.mxu0 0
        %783 = vmatpush2.bf16.msra.mxu0 0
        %784 = vmatprep.subr.bf16.mxu0 0
        %785 = vmatpush2.bf16.msra.mxu0 0
        %786 = vmatprep.mubr.bf16.mxu0 0
        %787 = vmatmul.mubr.bf16.gmra.mxu0 %v690
        %v788 = vpop.f32.mrf.mxu0
        %v789 = vadd.f32 %v656, %v788
        %v790 = vpop.f32.mrf.mxu0
        %v791 = vpop.f32.mrf.mxu0
        %v792 = vadd.f32 %v656, %v791
        %v793 = vpop.f32.mrf.mxu0
        %794 = vmatprep.mubr.bf16.mxu0 0
        %795 = vmatmul.mubr.bf16.gmra.mxu0 %v691
        %v796 = vpop.f32.mrf.mxu0
        %v797 = vadd.f32 %v656, %v796
        %v798 = vpop.f32.mrf.mxu0
        %v799 = vpop.f32.mrf.mxu0
        %v800 = vadd.f32 %v656, %v799
        %v801 = vpop.f32.mrf.mxu0
        %802 = vmatprep.mubr.bf16.mxu0 0
        %803 = vmatmul.mubr.bf16.gmra.mxu0 %v692
        %v804 = vpop.f32.mrf.mxu0
        %v805 = vadd.f32 %v656, %v804
        %v806 = vpop.f32.mrf.mxu0
        %v807 = vpop.f32.mrf.mxu0
        %v808 = vadd.f32 %v656, %v807
        %v809 = vpop.f32.mrf.mxu0
        %810 = vmatprep.mubr.bf16.mxu0 0
        %811 = vmatmul.mubr.bf16.gmra.mxu0 %v693
        %v812 = vpop.f32.mrf.mxu0
        %v813 = vadd.f32 %v656, %v812
        %v814 = vpop.f32.mrf.mxu0
        %v815 = vpop.f32.mrf.mxu0
        %v816 = vadd.f32 %v656, %v815
        %v817 = vpop.f32.mrf.mxu0
        %818 = vmatprep.mubr.bf16.mxu0 0
        %819 = vmatmul.mubr.bf16.gmra.mxu0 %v694
        %v820 = vpop.f32.mrf.mxu0
        %v821 = vadd.f32 %v656, %v820
        %v822 = vpop.f32.mrf.mxu0
        %v823 = vpop.f32.mrf.mxu0
        %v824 = vadd.f32 %v656, %v823
        %v825 = vpop.f32.mrf.mxu0
        %826 = vmatprep.mubr.bf16.mxu0 0
        %827 = vmatmul.mubr.bf16.gmra.mxu0 %v695
        %v828 = vpop.f32.mrf.mxu0
        %v829 = vadd.f32 %v656, %v828
        %v830 = vpop.f32.mrf.mxu0
        %v831 = vpop.f32.mrf.mxu0
        %v832 = vadd.f32 %v656, %v831
        %v833 = vpop.f32.mrf.mxu0
        %834 = vmatprep.mubr.bf16.mxu0 0
        %835 = vmatmul.mubr.bf16.gmra.mxu0 %v696
        %v836 = vpop.f32.mrf.mxu0
        %v837 = vadd.f32 %v656, %v836
        %v838 = vpop.f32.mrf.mxu0
        %v839 = vpop.f32.mrf.mxu0
        %v840 = vadd.f32 %v656, %v839
        %v841 = vpop.f32.mrf.mxu0
        %842 = vmatprep.mubr.bf16.mxu0 0
        %843 = vmatmul.mubr.bf16.gmra.mxu0 %v697
        %v844 = vpop.f32.mrf.mxu0
        %v845 = vadd.f32 %v656, %v844
        %v846 = vpop.f32.mrf.mxu0
        %v847 = vpop.f32.mrf.mxu0
        %v848 = vadd.f32 %v656, %v847
        %v849 = vpop.f32.mrf.mxu0
        %850 = vdwg.mxu0
        %p851 = scmp.lt.s32.totalorder %s22, 2
        // Predicated region
        $region57: #{tpu_custom_call.1} parent=35 // pred_check
          %p852 = pneg %p851
        $region58: #{tpu_custom_call.1} parent=35 // pred_check_branch
          %854 = sbr.rel (%p852) target = $region60
        $region59: #{tpu_custom_call.1} parent=35 // pred_region
          %s855 = smul.u32 %s23, 128
          %v856 = vmax.f32 %v789, 0.0
          %v857 = vmax.f32 %v792, 0.0
          %v858 = vmax.f32 %v797, 0.0
          %v859 = vmax.f32 %v800, 0.0
          %v860 = vmax.f32 %v805, 0.0
          %v861 = vmax.f32 %v808, 0.0
          %v862 = vmax.f32 %v813, 0.0
          %v863 = vmax.f32 %v816, 0.0
          %v864 = vmax.f32 %v821, 0.0
          %v865 = vmax.f32 %v824, 0.0
          %v866 = vmax.f32 %v829, 0.0
          %v867 = vmax.f32 %v832, 0.0
          %v868 = vmax.f32 %v837, 0.0
          %v869 = vmax.f32 %v840, 0.0
          %v870 = vmax.f32 %v845, 0.0
          %v871 = vmax.f32 %v848, 0.0
          %v872 = vpack.c.bf16 %v857, %v856
          %v873 = vpack.c.bf16 %v859, %v858
          %v874 = vpack.c.bf16 %v861, %v860
          %v875 = vpack.c.bf16 %v863, %v862
          %v876 = vpack.c.bf16 %v865, %v864
          %v877 = vpack.c.bf16 %v867, %v866
          %v878 = vpack.c.bf16 %v869, %v868
          %v879 = vpack.c.bf16 %v871, %v870
          %v888 = vunpack.c.l.b16 %v872
          %v889 = vunpack.c.h.b16 %v872
          %v890 = vunpack.c.l.b16 %v873
          %v891 = vunpack.c.h.b16 %v873
          %v892 = vunpack.c.l.b16 %v874
          %v893 = vunpack.c.h.b16 %v874
          %v894 = vunpack.c.l.b16 %v875
          %v895 = vunpack.c.h.b16 %v875
          %v896 = vunpack.c.l.b16 %v876
          %v897 = vunpack.c.h.b16 %v876
          %v898 = vunpack.c.l.b16 %v877
          %v899 = vunpack.c.h.b16 %v877
          %v900 = vunpack.c.l.b16 %v878
          %v901 = vunpack.c.h.b16 %v878
          %v902 = vunpack.c.l.b16 %v879
          %v903 = vunpack.c.h.b16 %v879
          %v904 = vpack.c.b16 %v888, %v888
          %v905 = vpack.c.b16 %v889, %v889
          %v906 = vpack.c.b16 %v890, %v890
          %v907 = vpack.c.b16 %v891, %v891
          %v908 = vpack.c.b16 %v892, %v892
          %v909 = vpack.c.b16 %v893, %v893
          %v910 = vpack.c.b16 %v894, %v894
          %v911 = vpack.c.b16 %v895, %v895
          %v912 = vpack.c.b16 %v896, %v896
          %v913 = vpack.c.b16 %v897, %v897
          %v914 = vpack.c.b16 %v898, %v898
          %v915 = vpack.c.b16 %v899, %v899
          %v916 = vpack.c.b16 %v900, %v900
          %v917 = vpack.c.b16 %v901, %v901
          %v918 = vpack.c.b16 %v902, %v902
          %v919 = vpack.c.b16 %v903, %v903
          %s936 = sshra.s32 %s855, 3
          %s937 = sand.u32 %s855, 7
          %s938 = smul.addr %s936, 4
          %s939 = scalar_lea.vmem [#allocation2], %s938
          %940 = vst [vmem:[%s939] sm:$0xf] %v904
          %941 = vst [vmem:[%s939 + $0x4] sm:$0xf] %v905
          %942 = vst [vmem:[%s939 + $0x8] sm:$0xf] %v906
          %943 = vst [vmem:[%s939 + $0xc] sm:$0xf] %v907
          %944 = vst [vmem:[%s939 + $0x10] sm:$0xf] %v908
          %945 = vst [vmem:[%s939 + $0x14] sm:$0xf] %v909
          %946 = vst [vmem:[%s939 + $0x18] sm:$0xf] %v910
          %947 = vst [vmem:[%s939 + $0x1c] sm:$0xf] %v911
          %948 = vst [vmem:[%s939 + $0x20] sm:$0xf] %v912
          %949 = vst [vmem:[%s939 + $0x24] sm:$0xf] %v913
          %950 = vst [vmem:[%s939 + $0x28] sm:$0xf] %v914
          %951 = vst [vmem:[%s939 + $0x2c] sm:$0xf] %v915
          %952 = vst [vmem:[%s939 + $0x30] sm:$0xf] %v916
          %953 = vst [vmem:[%s939 + $0x34] sm:$0xf] %v917
          %954 = vst [vmem:[%s939 + $0x38] sm:$0xf] %v918
          %955 = vst [vmem:[%s939 + $0x3c] sm:$0xf] %v919
        $region60: #{tpu_custom_call.1} parent=35 // pred_fallthru
          _
        %p956 = scmp.eq.s32.totalorder %s22, 2
        // Predicated region
        $region61: #{tpu_custom_call.1} parent=35 // pred_check
          %p957 = pneg %p956
        $region62: #{tpu_custom_call.1} parent=35 // pred_check_branch
          %959 = sbr.rel (%p957) target = $region64
        $region63: #{tpu_custom_call.1} parent=35 // pred_region
          %960 = vst [vmem:[#allocation10] sm:$0xff] %v789
          %961 = vst [vmem:[#allocation10 + $0x8] sm:$0xff] %v792
          %962 = vst [vmem:[#allocation10 + $0x10] sm:$0xff] %v797
          %963 = vst [vmem:[#allocation10 + $0x18] sm:$0xff] %v800
          %964 = vst [vmem:[#allocation10 + $0x20] sm:$0xff] %v805
          %965 = vst [vmem:[#allocation10 + $0x28] sm:$0xff] %v808
          %966 = vst [vmem:[#allocation10 + $0x30] sm:$0xff] %v813
          %967 = vst [vmem:[#allocation10 + $0x38] sm:$0xff] %v816
          %968 = vst [vmem:[#allocation10 + $0x40] sm:$0xff] %v821
          %969 = vst [vmem:[#allocation10 + $0x48] sm:$0xff] %v824
          %970 = vst [vmem:[#allocation10 + $0x50] sm:$0xff] %v829
          %971 = vst [vmem:[#allocation10 + $0x58] sm:$0xff] %v832
          %972 = vst [vmem:[#allocation10 + $0x60] sm:$0xff] %v837
          %973 = vst [vmem:[#allocation10 + $0x68] sm:$0xff] %v840
          %974 = vst [vmem:[#allocation10 + $0x70] sm:$0xff] %v845
          %975 = vst [vmem:[#allocation10 + $0x78] sm:$0xff] %v848
        $region64: #{tpu_custom_call.1} parent=35 // pred_fallthru
          _
        // Predicated region
        $region65: #{tpu_custom_call.1} parent=35 // pred_check
          %p976 = pneg %p147
        $region66: #{tpu_custom_call.1} parent=35 // pred_check_branch
          %978 = sbr.rel (%p976) target = $region68
        $region67: #{tpu_custom_call.1} parent=35 // pred_region
          %s979 = smul.u32 16, %s23
          %s981 = ssub.s32 2048, 2048
          %982 = vsyncadd [#allocation6], %s981
          %s983 = smul.addr %s979, 128
          %s984 = scalar_lea.hbm %s4, %s983
          %s985 = sshll.u32 [#allocation10], 4
          %s986 = int_to_ptr.vmem [resolvable:$true] %s985
          %991 = dma.vmem_to_hbm [thread:$0]  %s986, 2048, %s984, [#allocation6], 128, 128, 8
        $region68: #{tpu_custom_call.1} parent=35 // pred_fallthru
          _
        // Predicated region
        $region69: #{tpu_custom_call.1} parent=35 // pred_check
          %p992 = pneg %p147
        $region70: #{tpu_custom_call.1} parent=35 // pred_check_branch
          %994 = sbr.rel (%p992) target = $region72
        $region71: #{tpu_custom_call.1} parent=35 // pred_region
          %995 = dma.done [#allocation6], 2048
        $region72: #{tpu_custom_call.1} parent=35 // pred_fallthru
          _
      $region36: #{tpu_custom_call.1} parent=5 // pred_fallthru
        _
      %p996 = scmp.le.s32.totalorder 2, %s13
      // Predicated region
      $region73: #{tpu_custom_call.1} parent=5 // pred_check
        %p997 = pneg %p996
      $region74: #{tpu_custom_call.1} parent=5 // pred_check_branch
        %999 = sbr.rel (%p997) target = $region76
      $region75: #{tpu_custom_call.1} parent=5 // pred_region
        %s1000 = ssub.s32 %s13, 2
      $region76: #{tpu_custom_call.1} parent=5 // pred_fallthru
        _
    $region6: #{tpu_custom_call.1} parent=1 // loop_footer
      %s17 = sadd.s32 1, %s13
    $region7: #{tpu_custom_call.1} parent=1 // loop_footer_branch
      %12 = sbr.rel target = $region3
    $region8: #{tpu_custom_call.1} parent=1 // loop_exit
      _
    %1001 = vsyncpa [#allocation5], 1
    %s1002 = scalar_lea.sflag [#allocation5], 1
    %1003 = vsyncpa %s1002, 1
    %1004 = vsyncpa [#allocation8], 1
    %1005 = vsyncpa [#allocation6], 1
    %s1006 = scalar_lea.sflag [#allocation6], 1
    %1007 = vsyncpa %s1006, 1

</llo_original>
